<compile_context>
chip_gen: v5e
topology: v5e:2x2
jax: 0.10.0
libtpu: 0.0.40
codegen_flags: <defaults>
</compile_context>

<pallas_src>
import functools

import jax
import jax.numpy as jnp
from jax.experimental import pallas as pl
from jax.experimental.pallas import tpu as pltpu


def _round_up(n, m):
    return ((n + m - 1) // m) * m


def highway_kernel(x_ref, w_ref, b_ref, o_ref, *, num_layers, hp):
    # x_ref: (tile_rows, Hp); w_ref: (L, Hp, 2*Hp) pre-transposed + fused;
    # b_ref: (L, 1, 2*Hp); o_ref: (tile_rows, Hp).
    in_dtype = x_ref.dtype
    x = x_ref[...].astype(jnp.float32)        # residual / gating carried in f32
    for layer in range(num_layers):           # static unroll; layers are sequential
        # One fused MXU matmul per layer: [t | g] = x @ [Wt^T | Wg^T] + [bt | bg]
        y = jnp.dot(x.astype(in_dtype), w_ref[layer],
                    preferred_element_type=jnp.float32)
        y = y + b_ref[layer].astype(jnp.float32)      # (1, 2*Hp) broadcast
        t = jnp.maximum(y[:, :hp], 0.0)               # relu(transform(x))
        g = jax.nn.sigmoid(y[:, hp:])                 # sigmoid(gate(x))
        x = x + g * (t - x)                           # highway gate (fused form)
    o_ref[...] = x.astype(o_ref.dtype)


def highway_encoder(x, wt, bt, wg, bg, *, tile_rows=256):
    """x: (batch, seq, hidden). wt/wg: (L, H, H) nn.Linear (out,in). bt/bg: (L, H)."""
    B, S, H = x.shape
    L = wt.shape[0]
    rows = B * S

    # --- lane padding: hidden -> multiple of 128 -------------------------------
    Hp = _round_up(H, 128)
    ph = Hp - H

    # --- row tiling: clamp tile, keep >= 2 tiles when possible (megacore) ------
    rows8 = _round_up(rows, 8)
    tile_rows = min(_round_up(tile_rows, 8), rows8)
    if rows8 // tile_rows < 2 and rows8 >= 16:
        tile_rows = _round_up(rows8 // 2, 8)
    n_tiles = pl.cdiv(rows8, tile_rows)
    rows_p = n_tiles * tile_rows

    # --- host-side weight prep: pre-transpose, fuse t|g, zero-pad --------------
    # nn.Linear: y = x @ W.T + b.  Pre-transpose once so the kernel does x @ w.
    wtT = jnp.pad(jnp.swapaxes(wt, 1, 2), ((0, 0), (0, ph), (0, ph)))
    wgT = jnp.pad(jnp.swapaxes(wg, 1, 2), ((0, 0), (0, ph), (0, ph)))
    w_fused = jnp.concatenate([wtT, wgT], axis=-1)                 # (L, Hp, 2*Hp)
    b_fused = jnp.concatenate(
        [jnp.pad(bt, ((0, 0), (0, ph))), jnp.pad(bg, ((0, 0), (0, ph)))],
        axis=-1)[:, None, :]                                       # (L, 1, 2*Hp)

    x2d = jnp.pad(x.reshape(rows, H), ((0, rows_p - rows), (0, ph)))

    kernel = functools.partial(highway_kernel, num_layers=L, hp=Hp)

    # VMEM budget: resident (double-buffered) weights/biases + double-buffered
    # x/out tiles.  Only raise the scoped limit when the default would be tight.
    itemsize = jnp.dtype(x.dtype).itemsize
    vmem_needed = (2 * w_fused.size * w_fused.dtype.itemsize
                   + 2 * b_fused.size * b_fused.dtype.itemsize
                   + 4 * tile_rows * Hp * itemsize)
    cp_kwargs = dict(dimension_semantics=("parallel",))
    if vmem_needed > (16 << 20):
        cp_kwargs["vmem_limit_bytes"] = int(min(vmem_needed + (8 << 20), 64 << 20))

    out2d = pl.pallas_call(
        kernel,
        out_shape=jax.ShapeDtypeStruct((rows_p, Hp), x.dtype),
        grid_spec=pltpu.PrefetchScalarGridSpec(
            num_scalar_prefetch=0,
            grid=(n_tiles,),
            in_specs=[
                pl.BlockSpec((tile_rows, Hp), lambda i: (i, 0)),     # x row tile
                pl.BlockSpec((L, Hp, 2 * Hp), lambda i: (0, 0, 0)),  # fused weights (resident)
                pl.BlockSpec((L, 1, 2 * Hp), lambda i: (0, 0, 0)),   # fused biases  (resident)
            ],
            out_specs=pl.BlockSpec((tile_rows, Hp), lambda i: (i, 0)),
        ),
        compiler_params=pltpu.CompilerParams(**cp_kwargs),
    )(x2d, w_fused, b_fused)

    return out2d[:rows, :H].reshape(B, S, H)


def highway_encoder_ref(x, wt, bt, wg, bg):
    """Pure-JAX reference matching the PyTorch forward exactly."""
    for layer in range(wt.shape[0]):
        g = jax.nn.sigmoid(x @ wg[layer].T + bg[layer])
        t = jnp.maximum(x @ wt[layer].T + bt[layer], 0.0)
        x = g * t + (1.0 - g) * x
    return x


if __name__ == "__main__":
    num_layers = 2
    batch, seq, hidden = 2, 8, 32

    key = jax.random.PRNGKey(0)
    kx, kwt, kbt, kwg, kbg = jax.random.split(key, 5)

    # Deterministic parameter init (PyTorch Linear default: U(-1/sqrt(H), 1/sqrt(H))).
    bound = 1.0 / (hidden ** 0.5)
    x = jax.random.normal(kx, (batch, seq, hidden), dtype=jnp.float32)
    wt = jax.random.uniform(kwt, (num_layers, hidden, hidden), jnp.float32, -bound, bound)
    bt = jax.random.uniform(kbt, (num_layers, hidden), jnp.float32, -bound, bound)
    wg = jax.random.uniform(kwg, (num_layers, hidden, hidden), jnp.float32, -bound, bound)
    bg = jax.random.uniform(kbg, (num_layers, hidden), jnp.float32, -bound, bound)

    out = highway_encoder(x, wt, bt, wg, bg)
    out = jax.block_until_ready(out)

    ref = highway_encoder_ref(x, wt, bt, wg, bg)
    assert out.shape == (batch, seq, hidden)
    assert jnp.allclose(out, ref, atol=1e-5, rtol=1e-5), "mismatch vs reference"

    print("KERNEL_OK")
</pallas_src>

<mosaic_0001>
module attributes {stable_mosaic.version = 11 : i64} {
  func.func @highway_kernel(%arg0: i32, %arg1: memref<8x128xf32, #tpu.memory_space<vmem>>, %arg2: memref<2x128x256xf32, #tpu.memory_space<vmem>>, %arg3: memref<2x1x256xf32, #tpu.memory_space<vmem>>, %arg4: memref<8x128xf32, #tpu.memory_space<vmem>>) attributes {dimension_semantics = [#tpu.dimension_semantics<parallel>], iteration_bounds = array<i64: 2>, scalar_prefetch = 0 : i64, scratch_operands = 0 : i64, tpu.core_type = #tpu.core_type<tc>, window_params = [{transform_indices = @transform_0, window_bounds = array<i64: 8, 128>}, {pipeline_mode = #tpu.pipeline_mode<synchronous>, transform_indices = @transform_1, window_bounds = array<i64: 2, 128, 256>}, {pipeline_mode = #tpu.pipeline_mode<synchronous>, transform_indices = @transform_2, window_bounds = array<i64: 2, 1, 256>}, {transform_indices = @transform_3, window_bounds = array<i64: 8, 128>}]} {
    %c0 = arith.constant 0 : index
    %c0_0 = arith.constant 0 : index
    %0 = vector.load %arg1[%c0, %c0_0] : memref<8x128xf32, #tpu.memory_space<vmem>>, vector<8x128xf32>
    %c0_1 = arith.constant 0 : index
    %c0_2 = arith.constant 0 : index
    %c0_3 = arith.constant 0 : index
    %1 = vector.load %arg2[%c0_1, %c0_2, %c0_3] : memref<2x128x256xf32, #tpu.memory_space<vmem>>, vector<1x128x256xf32>
    %2 = vector.shape_cast %1 : vector<1x128x256xf32> to vector<128x256xf32>
    %cst = arith.constant dense<0.000000e+00> : vector<8x256xf32>
    %3 = tpu.matmul %0, %2, %cst {dimension_numbers = #tpu.dot_dimension_numbers<[1], [0], [0], [1], [0, 0, 1, 1], [], []>} : vector<8x128xf32>, vector<128x256xf32>, vector<8x256xf32> -> vector<8x256xf32>
    %c0_4 = arith.constant 0 : index
    %c0_5 = arith.constant 0 : index
    %c0_6 = arith.constant 0 : index
    %4 = vector.load %arg3[%c0_4, %c0_5, %c0_6] : memref<2x1x256xf32, #tpu.memory_space<vmem>>, vector<1x1x256xf32>
    %5 = vector.shape_cast %4 : vector<1x1x256xf32> to vector<1x256xf32>
    %6 = vector.broadcast %5 : vector<1x256xf32> to vector<8x256xf32>
    %7 = arith.addf %3, %6 : vector<8x256xf32>
    %8 = vector.extract_strided_slice %7 {offsets = [0, 0], sizes = [8, 128], strides = [1, 1]} : vector<8x256xf32> to vector<8x128xf32>
    %cst_7 = arith.constant 0.000000e+00 : f32
    %9 = vector.broadcast %cst_7 : f32 to vector<8x128xf32>
    %10 = arith.maximumf %8, %9 : vector<8x128xf32>
    %11 = vector.extract_strided_slice %7 {offsets = [0, 128], sizes = [8, 128], strides = [1, 1]} : vector<8x256xf32> to vector<8x128xf32>
    %12 = arith.negf %11 : vector<8x128xf32>
    %13 = math.exp %12 : vector<8x128xf32>
    %cst_8 = arith.constant 1.000000e+00 : f32
    %14 = vector.broadcast %cst_8 : f32 to vector<8x128xf32>
    %15 = arith.addf %14, %13 : vector<8x128xf32>
    %16 = arith.divf %14, %15 : vector<8x128xf32>
    %17 = arith.subf %10, %0 : vector<8x128xf32>
    %18 = arith.mulf %16, %17 : vector<8x128xf32>
    %19 = arith.addf %0, %18 : vector<8x128xf32>
    %c1 = arith.constant 1 : index
    %c0_9 = arith.constant 0 : index
    %c0_10 = arith.constant 0 : index
    %20 = vector.load %arg2[%c1, %c0_9, %c0_10] : memref<2x128x256xf32, #tpu.memory_space<vmem>>, vector<1x128x256xf32>
    %21 = vector.shape_cast %20 : vector<1x128x256xf32> to vector<128x256xf32>
    %cst_11 = arith.constant dense<0.000000e+00> : vector<8x256xf32>
    %22 = tpu.matmul %19, %21, %cst_11 {dimension_numbers = #tpu.dot_dimension_numbers<[1], [0], [0], [1], [0, 0, 1, 1], [], []>} : vector<8x128xf32>, vector<128x256xf32>, vector<8x256xf32> -> vector<8x256xf32>
    %c1_12 = arith.constant 1 : index
    %c0_13 = arith.constant 0 : index
    %c0_14 = arith.constant 0 : index
    %23 = vector.load %arg3[%c1_12, %c0_13, %c0_14] : memref<2x1x256xf32, #tpu.memory_space<vmem>>, vector<1x1x256xf32>
    %24 = vector.shape_cast %23 : vector<1x1x256xf32> to vector<1x256xf32>
    %25 = vector.broadcast %24 : vector<1x256xf32> to vector<8x256xf32>
    %26 = arith.addf %22, %25 : vector<8x256xf32>
    %27 = vector.extract_strided_slice %26 {offsets = [0, 0], sizes = [8, 128], strides = [1, 1]} : vector<8x256xf32> to vector<8x128xf32>
    %cst_15 = arith.constant 0.000000e+00 : f32
    %28 = vector.broadcast %cst_15 : f32 to vector<8x128xf32>
    %29 = arith.maximumf %27, %28 : vector<8x128xf32>
    %30 = vector.extract_strided_slice %26 {offsets = [0, 128], sizes = [8, 128], strides = [1, 1]} : vector<8x256xf32> to vector<8x128xf32>
    %31 = arith.negf %30 : vector<8x128xf32>
    %32 = math.exp %31 : vector<8x128xf32>
    %cst_16 = arith.constant 1.000000e+00 : f32
    %33 = vector.broadcast %cst_16 : f32 to vector<8x128xf32>
    %34 = arith.addf %33, %32 : vector<8x128xf32>
    %35 = arith.divf %33, %34 : vector<8x128xf32>
    %36 = arith.subf %29, %19 : vector<8x128xf32>
    %37 = arith.mulf %35, %36 : vector<8x128xf32>
    %38 = arith.addf %19, %37 : vector<8x128xf32>
    %c0_17 = arith.constant 0 : index
    %c0_18 = arith.constant 0 : index
    %39 = vector.load %arg4[%c0_17, %c0_18] : memref<8x128xf32, #tpu.memory_space<vmem>>, vector<8x128xf32>
    tpu.vector_store %arg4[%c0_17, %c0_18], %38 {strides = array<i32>} : memref<8x128xf32, #tpu.memory_space<vmem>>, vector<8x128xf32>,
    return
  }
  func.func @transform_0(%arg0: i32) -> (i32, i32) {
    %c0_i32 = arith.constant 0 : i32
    %c0_i32_0 = arith.constant 0 : i32
    return %arg0, %c0_i32 : i32, i32
  }
  func.func @transform_1(%arg0: i32) -> (i32, i32, i32) {
    %c0_i32 = arith.constant 0 : i32
    %c0_i32_0 = arith.constant 0 : i32
    %c0_i32_1 = arith.constant 0 : i32
    %c0_i32_2 = arith.constant 0 : i32
    return %c0_i32, %c0_i32_0, %c0_i32_1 : i32, i32, i32
  }
  func.func @transform_2(%arg0: i32) -> (i32, i32, i32) {
    %c0_i32 = arith.constant 0 : i32
    %c0_i32_0 = arith.constant 0 : i32
    %c0_i32_1 = arith.constant 0 : i32
    %c0_i32_2 = arith.constant 0 : i32
    return %c0_i32, %c0_i32_0, %c0_i32_1 : i32, i32, i32
  }
  func.func @transform_3(%arg0: i32) -> (i32, i32) {
    %c0_i32 = arith.constant 0 : i32
    %c0_i32_0 = arith.constant 0 : i32
    return %arg0, %c0_i32 : i32, i32
  }
}

</mosaic_0001>

<llo_original>
// kernel: tpu_custom_call.1
$region0: #{tpu_custom_call.1}
  #allocation0 [shape = 'u32[]', space=smem, size = 0x4, offset = 0x4, fixed_abs, tag = 'smem constant byte address 0x4 - core index']
  #allocation1 [shape = 'u32[72,128]{1,0:T(1,128)}', space=vmem, size = 0x9000, scoped, tag = 'internal scratch']
  %s0 = inlined_call_operand.hbm [shape: f32[16,128], index: 0, kind: input, shape index: {}]
  %s1 = inlined_call_operand.hbm [shape: f32[2,128,256], index: 1, kind: input, shape index: {}]
  %s2 = inlined_call_operand.hbm [shape: f32[2,1,256], index: 2, kind: input, shape index: {}]
  %s3 = inlined_call_operand.hbm [shape: f32[16,128], index: 3, kind: output, shape index: {}]
  %s4 = sld [smem:[#allocation0]]
  $region57: #{tpu_custom_call.1} parent=0
    _
  %s6 = ssub.s32 1, %s4
  %s7 = scalar_select 0, %s6, %s4
  $region1: #{tpu_custom_call.1} parent=0
    #allocation2 [shape = 'u8[8192]{0}', space=vmem, size = 0x2000, scoped, tag = 'input window, operand 0']
    #allocation3 [shape = 's32[2]{0}', space=sflag, size = 0x8, scoped, tag = 'scoped memory for tpu_custom_call.1']
    #allocation4 [shape = 's32[2]{0}', space=sflag, size = 0x8, scoped, tag = 'scoped memory for tpu_custom_call.1']
    #allocation5 [shape = 'u8[262144]{0}', space=vmem, size = 0x40000, scoped, tag = 'input window, operand 1, single buffered']
    #allocation6 [shape = 's32[1]{0}', space=sflag, size = 0x4, scoped, tag = 'scoped memory for tpu_custom_call.1']
    #allocation7 [shape = 'u8[2048]{0}', space=vmem, size = 0x800, scoped, tag = 'input window, operand 2, single buffered']
    #allocation8 [shape = 'u8[8192]{0}', space=vmem, size = 0x2000, scoped, tag = 'output window, operand 0']
    %8 = vsyncpa [#allocation3], 0
    %s9 = scalar_lea.sflag [#allocation3], 1
    %10 = vsyncpa %s9, 0
    %11 = vsyncpa [#allocation6], 0
    %12 = vsyncpa [#allocation4], 0
    %s13 = scalar_lea.sflag [#allocation4], 1
    %14 = vsyncpa %s13, 0
    loop: start=0, step=1, limit=4
    $region2: #{tpu_custom_call.1} parent=1 // loop_pre_header
      _
    $region3: #{tpu_custom_call.1} parent=1 // loop_header
      %s16 = sphi 0, %s20
      %p17 = scmp.ge.s32.totalorder %s16, 4
      %s26 = sphi 0, %s28
      %s29 = sphi 0, %s26
      %s30 = sphi 0, %s29
      %s46 = sphi 0, %s30
      %s50 = sphi 0, %s50
      %s52 = sphi 0, %s50
      %s53 = sphi 0, %s52
      %s67 = sphi 0, %s53
      %s71 = sphi 0, %s71
      %s73 = sphi 0, %s71
      %s74 = sphi 0, %s73
      %s88 = sphi 0, %s74
      %s94 = sphi 0, %s96
      %s97 = sphi 0, %s94
      %s98 = sphi 0, %s97
      %s114 = sphi 0, %s98
    $region4: #{tpu_custom_call.1} parent=1 // loop_header_branch
      %19 = sbr.rel (%p17) target = $region8
    $region5: #{tpu_custom_call.1} parent=1 // loop_body
      %s21 = ssub.s32 %s16, 1
      %s22 = ssub.s32 %s16, 2
      %s23 = sadd.s32 %s16, 1
      %s24 = ssub.s32 %s16, %s23
      %p25 = scmp.eq.s32.totalorder %s24, 0
      %s27 = sadd.s32 %s26, 1
      %s28 = scalar_select %p25, %s26, %s27
      %p31 = pneg %p25
      %p32 = scmp.eq.s32.totalorder %s16, 1
      %p33 = por %p31, %p32
      %p34 = scmp.ne.s32.totalorder %s26, %s29
      %p35 = scmp.eq.s32.totalorder %s16, 0
      %p36 = por %p34, %p35
      %p37 = scmp.ne.s32.totalorder %s26, %s29
      %p38 = scmp.eq.s32.totalorder %s21, 1
      %p39 = por %p37, %p38
      %p40 = scmp.ne.s32.totalorder %s29, %s30
      %p41 = scmp.eq.s32.totalorder %s21, 0
      %p42 = por %p40, %p41
      %p43 = scmp.ne.s32.totalorder %s29, %s30
      %p44 = scmp.eq.s32.totalorder %s22, 1
      %p45 = por %p43, %p44
      %p47 = scmp.ne.s32.totalorder %s30, %s46
      %p48 = scmp.eq.s32.totalorder %s22, 0
      %p49 = por %p47, %p48
      %s51 = sadd.s32 %s50, 1
      %p54 = scmp.eq.s32.totalorder %s16, 1
      %p55 = scmp.ne.s32.totalorder %s50, %s52
      %p56 = scmp.eq.s32.totalorder %s16, 0
      %p57 = por %p55, %p56
      %p58 = scmp.ne.s32.totalorder %s50, %s52
      %p59 = scmp.eq.s32.totalorder %s21, 1
      %p60 = por %p58, %p59
      %p61 = scmp.ne.s32.totalorder %s52, %s53
      %p62 = scmp.eq.s32.totalorder %s21, 0
      %p63 = por %p61, %p62
      %p64 = scmp.ne.s32.totalorder %s52, %s53
      %p65 = scmp.eq.s32.totalorder %s22, 1
      %p66 = por %p64, %p65
      %p68 = scmp.ne.s32.totalorder %s53, %s67
      %p69 = scmp.eq.s32.totalorder %s22, 0
      %p70 = por %p68, %p69
      %s72 = sadd.s32 %s71, 1
      %p75 = scmp.eq.s32.totalorder %s16, 1
      %p76 = scmp.ne.s32.totalorder %s71, %s73
      %p77 = scmp.eq.s32.totalorder %s16, 0
      %p78 = por %p76, %p77
      %p79 = scmp.ne.s32.totalorder %s71, %s73
      %p80 = scmp.eq.s32.totalorder %s21, 1
      %p81 = por %p79, %p80
      %p82 = scmp.ne.s32.totalorder %s73, %s74
      %p83 = scmp.eq.s32.totalorder %s21, 0
      %p84 = por %p82, %p83
      %p85 = scmp.ne.s32.totalorder %s73, %s74
      %p86 = scmp.eq.s32.totalorder %s22, 1
      %p87 = por %p85, %p86
      %p89 = scmp.ne.s32.totalorder %s74, %s88
      %p90 = scmp.eq.s32.totalorder %s22, 0
      %p91 = por %p89, %p90
      %s92 = ssub.s32 %s16, %s23
      %p93 = scmp.eq.s32.totalorder %s92, 0
      %s95 = sadd.s32 %s94, 1
      %s96 = scalar_select %p93, %s94, %s95
      %p99 = pneg %p93
      %p100 = scmp.eq.s32.totalorder %s16, 1
      %p101 = por %p99, %p100
      %p102 = scmp.ne.s32.totalorder %s94, %s97
      %p103 = scmp.eq.s32.totalorder %s16, 0
      %p104 = por %p102, %p103
      %p105 = scmp.ne.s32.totalorder %s94, %s97
      %p106 = scmp.eq.s32.totalorder %s21, 1
      %p107 = por %p105, %p106
      %p108 = scmp.ne.s32.totalorder %s97, %s98
      %p109 = scmp.eq.s32.totalorder %s21, 0
      %p110 = por %p108, %p109
      %p111 = scmp.ne.s32.totalorder %s97, %s98
      %p112 = scmp.eq.s32.totalorder %s22, 1
      %p113 = por %p111, %p112
      %p115 = scmp.ne.s32.totalorder %s98, %s114
      %p116 = scmp.eq.s32.totalorder %s22, 0
      %p117 = por %p115, %p116
      %p118 = scmp.le.s32.totalorder 1, %s16
      %p119 = scmp.lt.s32.totalorder %s16, 3
      %p120 = pnand %p118, %p119
      %p121 = pneg %p120
      // Predicated region
      $region9: #{tpu_custom_call.1} parent=5 // pred_check
        _
      $region10: #{tpu_custom_call.1} parent=5 // pred_check_branch
        %123 = sbr.rel (%p120) target = $region12
      $region11: #{tpu_custom_call.1} parent=5 // pred_region
        %s124 = ssub.s32 %s16, 1
        // Predicated region
        $region13: #{tpu_custom_call.1} parent=11 // pred_check
          %p125 = pneg %p63
        $region14: #{tpu_custom_call.1} parent=11 // pred_check_branch
          %127 = sbr.rel (%p125) target = $region16
        $region15: #{tpu_custom_call.1} parent=11 // pred_region
          %129 = vsyncadd [#allocation6], 0
          %s130 = sshll.u32 %s1, 4
          %s131 = int_to_ptr.hbm [resolvable:$true] %s130
          %s132 = sshll.u32 [#allocation5], 4
          %s133 = int_to_ptr.vmem [resolvable:$true] %s132
          %138 = dma.hbm_to_vmem [thread:$0]  %s131, 8192, %s133, [#allocation6], 256, 256, 16
        $region16: #{tpu_custom_call.1} parent=11 // pred_fallthru
          _
        // Predicated region
        $region17: #{tpu_custom_call.1} parent=11 // pred_check
          %p139 = pneg %p84
        $region18: #{tpu_custom_call.1} parent=11 // pred_check_branch
          %141 = sbr.rel (%p139) target = $region20
        $region19: #{tpu_custom_call.1} parent=11 // pred_region
          %143 = vsyncadd [#allocation6], 0
          %s144 = sshll.u32 %s2, 4
          %s145 = int_to_ptr.hbm [resolvable:$true] %s144
          %s146 = sshll.u32 [#allocation7], 4
          %s147 = int_to_ptr.vmem [resolvable:$true] %s146
          %152 = dma.hbm_to_vmem [thread:$0]  %s145, 64, %s147, [#allocation6], 32, 32, 2
        $region20: #{tpu_custom_call.1} parent=11 // pred_fallthru
          _
      $region12: #{tpu_custom_call.1} parent=5 // pred_fallthru
        _
      %p153 = scmp.lt.s32.totalorder %s16, 2
      // Predicated region
      $region21: #{tpu_custom_call.1} parent=5 // pred_check
        %p154 = pneg %p153
      $region22: #{tpu_custom_call.1} parent=5 // pred_check_branch
        %156 = sbr.rel (%p154) target = $region24
      $region23: #{tpu_custom_call.1} parent=5 // pred_region
        // Predicated region
        $region25: #{tpu_custom_call.1} parent=23 // pred_check
          %p157 = pneg %p36
        $region26: #{tpu_custom_call.1} parent=23 // pred_check_branch
          %159 = sbr.rel (%p157) target = $region28
        $region27: #{tpu_custom_call.1} parent=23 // pred_region
          %s160 = sand.u32 %s26, 1
          %s161 = scalar_lea.sflag [#allocation3], %s160
          %s162 = sand.u32 %s26, 1
          %s163 = smul.addr %s162, 8
          %s164 = scalar_lea.vmem [#allocation2], %s163
          %166 = vsyncadd %s161, 0
          %s167 = smul.addr %s16, 8
          %s168 = scalar_lea.hbm %s0, %s167
          %s170 = sshll.u32 %s168, 4
          %s171 = int_to_ptr.hbm [resolvable:$true] %s170
          %s172 = sshll.u32 %s164, 4
          %s173 = int_to_ptr.vmem [resolvable:$true] %s172
          %175 = dma.hbm_to_vmem [thread:$0]  %s171, 128, %s173, %s161
        $region28: #{tpu_custom_call.1} parent=23 // pred_fallthru
          _
      $region24: #{tpu_custom_call.1} parent=5 // pred_fallthru
        _
      %p176 = scmp.le.s32.totalorder 1, %s16
      %p177 = scmp.lt.s32.totalorder %s16, 3
      %p178 = pnand %p176, %p177
      %p179 = pneg %p178
      // Predicated region
      $region29: #{tpu_custom_call.1} parent=5 // pred_check
        _
      $region30: #{tpu_custom_call.1} parent=5 // pred_check_branch
        %181 = sbr.rel (%p178) target = $region32
      $region31: #{tpu_custom_call.1} parent=5 // pred_region
        %s182 = ssub.s32 %s16, 1
        %s183 = sand.u32 %s29, 1
        %s184 = scalar_lea.sflag [#allocation3], %s183
        %s185 = sand.u32 %s29, 1
        %s186 = smul.addr %s185, 8
        %s187 = scalar_lea.vmem [#allocation2], %s186
        // Predicated region
        $region33: #{tpu_custom_call.1} parent=31 // pred_check
          %p188 = pneg %p42
        $region34: #{tpu_custom_call.1} parent=31 // pred_check_branch
          %190 = sbr.rel (%p188) target = $region36
        $region35: #{tpu_custom_call.1} parent=31 // pred_region
          %192 = dma.done %s184, 128
        $region36: #{tpu_custom_call.1} parent=31 // pred_fallthru
          _
        // Predicated region
        $region37: #{tpu_custom_call.1} parent=31 // pred_check
          %p193 = pneg %p63
        $region38: #{tpu_custom_call.1} parent=31 // pred_check_branch
          %195 = sbr.rel (%p193) target = $region40
        $region39: #{tpu_custom_call.1} parent=31 // pred_region
          %197 = dma.done [#allocation6], 8192
        $region40: #{tpu_custom_call.1} parent=31 // pred_fallthru
          _
        // Predicated region
        $region41: #{tpu_custom_call.1} parent=31 // pred_check
          %p198 = pneg %p84
        $region42: #{tpu_custom_call.1} parent=31 // pred_check_branch
          %200 = sbr.rel (%p198) target = $region44
        $region43: #{tpu_custom_call.1} parent=31 // pred_region
          %202 = dma.done [#allocation6], 64
        $region44: #{tpu_custom_call.1} parent=31 // pred_fallthru
          _
        %s203 = sand.u32 %s29, 1
        %s204 = scalar_lea.sflag [#allocation3], %s203
        %s205 = sand.u32 %s29, 1
        %s206 = smul.addr %s205, 8
        %s207 = scalar_lea.vmem [#allocation2], %s206
        %p208 = pneg %p42
        %p209 = pneg %p39
        %p210 = pneg %p63
        %p211 = pneg %p60
        %p212 = pneg %p84
        %p213 = pneg %p81
        %p214 = pneg %p110
        %p215 = pneg %p107
        %s216 = sand.u32 %s97, 1
        %s217 = scalar_lea.sflag [#allocation4], %s216
        %s218 = sand.u32 %s97, 1
        %s219 = smul.addr %s218, 8
        %s220 = scalar_lea.vmem [#allocation8], %s219
        %v221 = vld [vmem:[%s187] sm:$0xff]
        %v222 = vld [vmem:[#allocation5] sm:$0xff]
        %v223 = vld [vmem:[#allocation5 + $0x8] sm:$0xff]
        %v224 = vld [vmem:[#allocation5 + $0x10] sm:$0xff]
        %v225 = vld [vmem:[#allocation5 + $0x18] sm:$0xff]
        %v226 = vld [vmem:[#allocation5 + $0x20] sm:$0xff]
        %v227 = vld [vmem:[#allocation5 + $0x28] sm:$0xff]
        %v228 = vld [vmem:[#allocation5 + $0x30] sm:$0xff]
        %v229 = vld [vmem:[#allocation5 + $0x38] sm:$0xff]
        %v230 = vld [vmem:[#allocation5 + $0x40] sm:$0xff]
        %v231 = vld [vmem:[#allocation5 + $0x48] sm:$0xff]
        %v232 = vld [vmem:[#allocation5 + $0x50] sm:$0xff]
        %v233 = vld [vmem:[#allocation5 + $0x58] sm:$0xff]
        %v234 = vld [vmem:[#allocation5 + $0x60] sm:$0xff]
        %v235 = vld [vmem:[#allocation5 + $0x68] sm:$0xff]
        %v236 = vld [vmem:[#allocation5 + $0x70] sm:$0xff]
        %v237 = vld [vmem:[#allocation5 + $0x78] sm:$0xff]
        %v238 = vld [vmem:[#allocation5 + $0x80] sm:$0xff]
        %v239 = vld [vmem:[#allocation5 + $0x88] sm:$0xff]
        %v240 = vld [vmem:[#allocation5 + $0x90] sm:$0xff]
        %v241 = vld [vmem:[#allocation5 + $0x98] sm:$0xff]
        %v242 = vld [vmem:[#allocation5 + $0xa0] sm:$0xff]
        %v243 = vld [vmem:[#allocation5 + $0xa8] sm:$0xff]
        %v244 = vld [vmem:[#allocation5 + $0xb0] sm:$0xff]
        %v245 = vld [vmem:[#allocation5 + $0xb8] sm:$0xff]
        %v246 = vld [vmem:[#allocation5 + $0xc0] sm:$0xff]
        %v247 = vld [vmem:[#allocation5 + $0xc8] sm:$0xff]
        %v248 = vld [vmem:[#allocation5 + $0xd0] sm:$0xff]
        %v249 = vld [vmem:[#allocation5 + $0xd8] sm:$0xff]
        %v250 = vld [vmem:[#allocation5 + $0xe0] sm:$0xff]
        %v251 = vld [vmem:[#allocation5 + $0xe8] sm:$0xff]
        %v252 = vld [vmem:[#allocation5 + $0xf0] sm:$0xff]
        %v253 = vld [vmem:[#allocation5 + $0xf8] sm:$0xff]
        %v254 = vld [vmem:[#allocation7] sm:$0x3]
        %v256 = vperm.slane %v254, 0
        %v257 = vperm.slane %v254, 1
        %260 = vmatpush.msra.mxu0 %v252
        %261 = vmatpush.msra.mxu0 %v250
        %262 = vmatpush.msra.mxu0 %v248
        %263 = vmatpush.msra.mxu0 %v246
        %264 = vmatpush.msra.mxu0 %v244
        %265 = vmatpush.msra.mxu0 %v242
        %266 = vmatpush.msra.mxu0 %v240
        %267 = vmatpush.msra.mxu0 %v238
        %268 = vmatpush.msra.mxu0 %v236
        %269 = vmatpush.msra.mxu0 %v234
        %270 = vmatpush.msra.mxu0 %v232
        %271 = vmatpush.msra.mxu0 %v230
        %272 = vmatpush.msra.mxu0 %v228
        %273 = vmatpush.msra.mxu0 %v226
        %274 = vmatpush.msra.mxu0 %v224
        %275 = vmatpush.msra.mxu0 %v222
        %276 = vmatmul.f32.gmra.mxu0 %v221
        %v277 = vpop.f32.mrf.mxu0
        %v278 = vadd.f32 %v256, %v277
        %279 = vdwg.mxu0
        %280 = vmatpush.msra.mxu0 %v253
        %281 = vmatpush.msra.mxu0 %v251
        %282 = vmatpush.msra.mxu0 %v249
        %283 = vmatpush.msra.mxu0 %v247
        %284 = vmatpush.msra.mxu0 %v245
        %285 = vmatpush.msra.mxu0 %v243
        %286 = vmatpush.msra.mxu0 %v241
        %287 = vmatpush.msra.mxu0 %v239
        %288 = vmatpush.msra.mxu0 %v237
        %289 = vmatpush.msra.mxu0 %v235
        %290 = vmatpush.msra.mxu0 %v233
        %291 = vmatpush.msra.mxu0 %v231
        %292 = vmatpush.msra.mxu0 %v229
        %293 = vmatpush.msra.mxu0 %v227
        %294 = vmatpush.msra.mxu0 %v225
        %295 = vmatpush.msra.mxu0 %v223
        %296 = vmatmul.f32.gmra.mxu0 %v221
        %v297 = vpop.f32.mrf.mxu0
        %v298 = vadd.f32 %v257, %v297
        %299 = vdwg.mxu0
        %v300 = vmax.f32 %v278, 0.0
        %v301 = vxor.u32 %v298, 2147483648
        %v302 = vmul.f32 %v301, 1.442695
        %v303 = vpow.pop %v302
        %v304 = vadd.f32 %v303, 1.0
        %v305 = vrcp.pop %v304
        %v306 = vmul.f32 %v304, %v305
        %v307 = vsub.f32 1.0, %v306
        %v308 = vmul.f32 %v305, %v307
        %v309 = vadd.f32 %v305, %v308
        %vm310 = vweird.f32 %v304
        %vm311 = vweird.f32 %v305
        %vm312 = vmor %vm310, %vm311
        %v313 = vsel %vm312, %v305, %v309
        %v314 = vand.u32 2147483647, %v304
        %vm315 = vcmp.eq.f32.partialorder %v314, 8.507059e+37
        %v316 = vand.u32 %v304, 2147483648
        %v317 = vor.u32 1.1754944e-38, %v316
        %v318 = vsel %vm315, %v317, %v313
        %v319 = vmul.f32 1.0, %v318
        %v320 = vsub.f32 %v300, %v221
        %v321 = vmul.f32 %v319, %v320
        %v322 = vadd.f32 %v221, %v321
        %s323 = scalar_lea.vmem [#allocation5], 256
        %v324 = vld [vmem:[%s323] sm:$0xff]
        %v325 = vld [vmem:[%s323 + $0x8] sm:$0xff]
        %v326 = vld [vmem:[%s323 + $0x10] sm:$0xff]
        %v327 = vld [vmem:[%s323 + $0x18] sm:$0xff]
        %v328 = vld [vmem:[%s323 + $0x20] sm:$0xff]
        %v329 = vld [vmem:[%s323 + $0x28] sm:$0xff]
        %v330 = vld [vmem:[%s323 + $0x30] sm:$0xff]
        %v331 = vld [vmem:[%s323 + $0x38] sm:$0xff]
        %v332 = vld [vmem:[%s323 + $0x40] sm:$0xff]
        %v333 = vld [vmem:[%s323 + $0x48] sm:$0xff]
        %v334 = vld [vmem:[%s323 + $0x50] sm:$0xff]
        %v335 = vld [vmem:[%s323 + $0x58] sm:$0xff]
        %v336 = vld [vmem:[%s323 + $0x60] sm:$0xff]
        %v337 = vld [vmem:[%s323 + $0x68] sm:$0xff]
        %v338 = vld [vmem:[%s323 + $0x70] sm:$0xff]
        %v339 = vld [vmem:[%s323 + $0x78] sm:$0xff]
        %v340 = vld [vmem:[%s323 + $0x80] sm:$0xff]
        %v341 = vld [vmem:[%s323 + $0x88] sm:$0xff]
        %v342 = vld [vmem:[%s323 + $0x90] sm:$0xff]
        %v343 = vld [vmem:[%s323 + $0x98] sm:$0xff]
        %v344 = vld [vmem:[%s323 + $0xa0] sm:$0xff]
        %v345 = vld [vmem:[%s323 + $0xa8] sm:$0xff]
        %v346 = vld [vmem:[%s323 + $0xb0] sm:$0xff]
        %v347 = vld [vmem:[%s323 + $0xb8] sm:$0xff]
        %v348 = vld [vmem:[%s323 + $0xc0] sm:$0xff]
        %v349 = vld [vmem:[%s323 + $0xc8] sm:$0xff]
        %v350 = vld [vmem:[%s323 + $0xd0] sm:$0xff]
        %v351 = vld [vmem:[%s323 + $0xd8] sm:$0xff]
        %v352 = vld [vmem:[%s323 + $0xe0] sm:$0xff]
        %v353 = vld [vmem:[%s323 + $0xe8] sm:$0xff]
        %v354 = vld [vmem:[%s323 + $0xf0] sm:$0xff]
        %v355 = vld [vmem:[%s323 + $0xf8] sm:$0xff]
        %s356 = scalar_lea.vmem [#allocation7], 2
        %v357 = vld [vmem:[%s356] sm:$0x3]
        %v359 = vperm.slane %v357, 0
        %v360 = vperm.slane %v357, 1
        %363 = vmatpush.msra.mxu0 %v354
        %364 = vmatpush.msra.mxu0 %v352
        %365 = vmatpush.msra.mxu0 %v350
        %366 = vmatpush.msra.mxu0 %v348
        %367 = vmatpush.msra.mxu0 %v346
        %368 = vmatpush.msra.mxu0 %v344
        %369 = vmatpush.msra.mxu0 %v342
        %370 = vmatpush.msra.mxu0 %v340
        %371 = vmatpush.msra.mxu0 %v338
        %372 = vmatpush.msra.mxu0 %v336
        %373 = vmatpush.msra.mxu0 %v334
        %374 = vmatpush.msra.mxu0 %v332
        %375 = vmatpush.msra.mxu0 %v330
        %376 = vmatpush.msra.mxu0 %v328
        %377 = vmatpush.msra.mxu0 %v326
        %378 = vmatpush.msra.mxu0 %v324
        %379 = vmatmul.f32.gmra.mxu0 %v322
        %v380 = vpop.f32.mrf.mxu0
        %v381 = vadd.f32 %v359, %v380
        %382 = vdwg.mxu0
        %383 = vmatpush.msra.mxu0 %v355
        %384 = vmatpush.msra.mxu0 %v353
        %385 = vmatpush.msra.mxu0 %v351
        %386 = vmatpush.msra.mxu0 %v349
        %387 = vmatpush.msra.mxu0 %v347
        %388 = vmatpush.msra.mxu0 %v345
        %389 = vmatpush.msra.mxu0 %v343
        %390 = vmatpush.msra.mxu0 %v341
        %391 = vmatpush.msra.mxu0 %v339
        %392 = vmatpush.msra.mxu0 %v337
        %393 = vmatpush.msra.mxu0 %v335
        %394 = vmatpush.msra.mxu0 %v333
        %395 = vmatpush.msra.mxu0 %v331
        %396 = vmatpush.msra.mxu0 %v329
        %397 = vmatpush.msra.mxu0 %v327
        %398 = vmatpush.msra.mxu0 %v325
        %399 = vmatmul.f32.gmra.mxu0 %v322
        %v400 = vpop.f32.mrf.mxu0
        %v401 = vadd.f32 %v360, %v400
        %402 = vdwg.mxu0
        %v403 = vmax.f32 %v381, 0.0
        %v404 = vxor.u32 %v401, 2147483648
        %v405 = vmul.f32 %v404, 1.442695
        %v406 = vpow.pop %v405
        %v407 = vadd.f32 %v406, 1.0
        %v408 = vrcp.pop %v407
        %v409 = vmul.f32 %v407, %v408
        %v410 = vsub.f32 1.0, %v409
        %v411 = vmul.f32 %v408, %v410
        %v412 = vadd.f32 %v408, %v411
        %vm413 = vweird.f32 %v407
        %vm414 = vweird.f32 %v408
        %vm415 = vmor %vm413, %vm414
        %v416 = vsel %vm415, %v408, %v412
        %v417 = vand.u32 2147483647, %v407
        %vm418 = vcmp.eq.f32.partialorder %v417, 8.507059e+37
        %v419 = vand.u32 %v407, 2147483648
        %v420 = vor.u32 1.1754944e-38, %v419
        %v421 = vsel %vm418, %v420, %v416
        %v422 = vmul.f32 1.0, %v421
        %v423 = vsub.f32 %v403, %v322
        %v424 = vmul.f32 %v422, %v423
        %v425 = vadd.f32 %v322, %v424
        %426 = vst [vmem:[%s220] sm:$0xff] %v425
        %s427 = sand.u32 %s97, 1
        %s428 = scalar_lea.sflag [#allocation4], %s427
        %s429 = sand.u32 %s97, 1
        %s430 = smul.addr %s429, 8
        %s431 = scalar_lea.vmem [#allocation8], %s430
        // Predicated region
        $region45: #{tpu_custom_call.1} parent=31 // pred_check
          %p432 = pneg %p107
        $region46: #{tpu_custom_call.1} parent=31 // pred_check_branch
          %434 = sbr.rel (%p432) target = $region48
        $region47: #{tpu_custom_call.1} parent=31 // pred_region
          %436 = vsyncadd %s428, 0
          %s437 = smul.addr %s21, 8
          %s438 = scalar_lea.hbm %s3, %s437
          %s440 = sshll.u32 %s431, 4
          %s441 = int_to_ptr.vmem [resolvable:$true] %s440
          %s442 = sshll.u32 %s438, 4
          %s443 = int_to_ptr.hbm [resolvable:$true] %s442
          %445 = dma.vmem_to_hbm [thread:$0]  %s441, 128, %s443, %s428
        $region48: #{tpu_custom_call.1} parent=31 // pred_fallthru
          _
      $region32: #{tpu_custom_call.1} parent=5 // pred_fallthru
        _
      %p446 = scmp.le.s32.totalorder 2, %s16
      // Predicated region
      $region49: #{tpu_custom_call.1} parent=5 // pred_check
        %p447 = pneg %p446
      $region50: #{tpu_custom_call.1} parent=5 // pred_check_branch
        %449 = sbr.rel (%p447) target = $region52
      $region51: #{tpu_custom_call.1} parent=5 // pred_region
        %s450 = ssub.s32 %s16, 2
        // Predicated region
        $region53: #{tpu_custom_call.1} parent=51 // pred_check
          %p451 = pneg %p113
        $region54: #{tpu_custom_call.1} parent=51 // pred_check_branch
          %453 = sbr.rel (%p451) target = $region56
        $region55: #{tpu_custom_call.1} parent=51 // pred_region
          %s454 = sand.u32 %s98, 1
          %s455 = scalar_lea.sflag [#allocation4], %s454
          %s456 = sand.u32 %s98, 1
          %s457 = smul.addr %s456, 8
          %s458 = scalar_lea.vmem [#allocation8], %s457
          %460 = dma.done %s455, 128
        $region56: #{tpu_custom_call.1} parent=51 // pred_fallthru
          _
      $region52: #{tpu_custom_call.1} parent=5 // pred_fallthru
        _
    $region6: #{tpu_custom_call.1} parent=1 // loop_footer
      %s20 = sadd.s32 1, %s16
    $region7: #{tpu_custom_call.1} parent=1 // loop_footer_branch
      %15 = sbr.rel target = $region3
    $region8: #{tpu_custom_call.1} parent=1 // loop_exit
      _
    %461 = vsyncpa [#allocation3], 1
    %s462 = scalar_lea.sflag [#allocation3], 1
    %463 = vsyncpa %s462, 1
    %464 = vsyncpa [#allocation6], 1
    %465 = vsyncpa [#allocation4], 1
    %s466 = scalar_lea.sflag [#allocation4], 1
    %467 = vsyncpa %s466, 1

</llo_original>
